<compile_context>
chip_gen: v7x
topology: tpu7x:2x2x1
jax: 0.10.0
libtpu: 0.0.40
codegen_flags: <defaults>
</compile_context>

<pallas_src>
import jax
import jax.numpy as jnp
import numpy as np
from jax.experimental import pallas as pl
from jax.experimental.pallas import tpu as pltpu


def _mlp_kernel(xT_ref, w1_ref, b1_ref, w2_ref, b2_ref, oT_ref):
    # xT: (d_in, tb)   -- batch on the lane axis
    # w1: (d_hid, d_in), b1: (d_hid, 1)   (PyTorch nn.Linear layout)
    # w2: (d_out, d_hid), b2: (d_out, 1)
    x = xT_ref[...]
    h = jnp.dot(w1_ref[...], x, preferred_element_type=jnp.float32)   # (d_hid, tb) f32
    h = jnp.maximum(h + b1_ref[...], 0.0)                             # bias + ReLU in f32
    h = h.astype(w2_ref.dtype)                                        # bf16 for 2nd MXU pass
    o = jnp.dot(w2_ref[...], h, preferred_element_type=jnp.float32) + b2_ref[...]
    oT_ref[...] = o.astype(oT_ref.dtype)                              # (d_out, tb)


def classifier_forward(outcomes, covariates, params, *, tb_max=512, use_bf16=True):
    """Pallas implementation of Classifier.forward(outcomes, covariates)."""
    del covariates  # see TODO above: layer-1 input width == num_outcomes
    w1, b1, w2, b2 = params                     # PyTorch layout: W (out, in), b (out,)
    B, d_in = outcomes.shape
    d_hid = w1.shape[0]
    d_out = w2.shape[0]
    out_dtype = outcomes.dtype

    mm_dtype = jnp.bfloat16 if use_bf16 else out_dtype
    # Lane-dense layout: batch on the 128-lane axis (transpose done in the wrapper).
    xT = outcomes.T.astype(mm_dtype)            # (d_in, B)
    w1m = w1.astype(mm_dtype)
    w2m = w2.astype(mm_dtype)
    b1c = b1.reshape(d_hid, 1).astype(jnp.float32)
    b2c = b2.reshape(d_out, 1).astype(jnp.float32)

    # One big tile if the batch fits in a single step; else 512-wide (x128) tiles.
    tb = B if B <= tb_max else tb_max
    B_pad = ((B + tb - 1) // tb) * tb
    if B_pad != B:
        xT = jnp.pad(xT, ((0, 0), (0, B_pad - B)))

    oT = pl.pallas_call(
        _mlp_kernel,
        out_shape=jax.ShapeDtypeStruct((d_out, B_pad), out_dtype),
        grid_spec=pltpu.PrefetchScalarGridSpec(
            num_scalar_prefetch=0,
            grid=(B_pad // tb,),
            in_specs=[
                pl.BlockSpec((d_in, tb), lambda i: (0, i)),      # x^T tile (streamed)
                pl.BlockSpec((d_hid, d_in), lambda i: (0, 0)),   # W1 (resident)
                pl.BlockSpec((d_hid, 1), lambda i: (0, 0)),      # b1 (resident)
                pl.BlockSpec((d_out, d_hid), lambda i: (0, 0)),  # W2 (resident)
                pl.BlockSpec((d_out, 1), lambda i: (0, 0)),      # b2 (resident)
            ],
            out_specs=pl.BlockSpec((d_out, tb), lambda i: (0, i)),
        ),
        compiler_params=pltpu.CompilerParams(
            dimension_semantics=("parallel",),   # lets v7x's 2 TensorCores split the batch
        ),
    )(xT, w1m, b1c, w2m, b2c)

    out = oT[:, :B].T                            # back to (B, d_out), drop batch padding
    # matches `.squeeze()` in Classifier.forward (no-op for these shapes)
    return jnp.squeeze(out)


def init_params(key, num_outcomes, num_treatments, num_covariates,
                width=32, depth=2, dtype=jnp.float32):
    """Deterministic PyTorch-nn.Linear-style init (torch layout: W (out, in), b (out,))."""
    sizes = [num_outcomes] + [width] * (depth - 1) + [num_treatments + num_covariates]
    assert len(sizes) == 3, "this fused kernel implements the depth=2 MLP"
    keys = jax.random.split(key, 4)

    def linear_init(kw, kb, fan_in, fan_out):
        bound = 1.0 / np.sqrt(fan_in)
        w = jax.random.uniform(kw, (fan_out, fan_in), dtype, -bound, bound)
        b = jax.random.uniform(kb, (fan_out,), dtype, -bound, bound)
        return w, b

    w1, b1 = linear_init(keys[0], keys[1], sizes[0], sizes[1])
    w2, b2 = linear_init(keys[2], keys[3], sizes[1], sizes[2])
    return (w1, b1, w2, b2)


def _reference(outcomes, params, use_bf16=True):
    """Pure-JAX reference mirroring the kernel's dtype choices (bf16 MXU, f32 acc)."""
    w1, b1, w2, b2 = params
    mm_dtype = jnp.bfloat16 if use_bf16 else outcomes.dtype
    h = jnp.dot(outcomes.astype(mm_dtype), w1.T.astype(mm_dtype),
                preferred_element_type=jnp.float32) + b1
    h = jnp.maximum(h, 0.0)
    o = jnp.dot(h.astype(mm_dtype), w2.T.astype(mm_dtype),
                preferred_element_type=jnp.float32) + b2
    return jnp.squeeze(o)


if __name__ == "__main__":
    # Small synthetic configuration.
    num_outcomes, num_treatments, num_covariates = 16, 4, 4
    batch = 16

    key = jax.random.PRNGKey(0)
    k_param, k_out, k_cov = jax.random.split(key, 3)

    params = init_params(k_param, num_outcomes, num_treatments, num_covariates)
    outcomes = jax.random.normal(k_out, (batch, num_outcomes), jnp.float32)
    covariates = jax.random.normal(k_cov, (batch, num_covariates), jnp.float32)

    pred = classifier_forward(outcomes, covariates, params, use_bf16=True)
    pred = jax.block_until_ready(pred)

    ref = _reference(outcomes, params, use_bf16=True)
    np.testing.assert_allclose(np.asarray(pred, np.float32), np.asarray(ref, np.float32),
                               rtol=5e-3, atol=5e-3)

    print("KERNEL_OK")
</pallas_src>

<mosaic_0001>
module attributes {stable_mosaic.version = 11 : i64} {
  func.func @_mlp_kernel(%arg0: i32, %arg1: memref<16x16xbf16, #tpu.memory_space<vmem>>, %arg2: memref<32x16xbf16, #tpu.memory_space<vmem>>, %arg3: memref<32x1xf32, #tpu.memory_space<vmem>>, %arg4: memref<8x32xbf16, #tpu.memory_space<vmem>>, %arg5: memref<8x1xf32, #tpu.memory_space<vmem>>, %arg6: memref<8x16xf32, #tpu.memory_space<vmem>>) attributes {dimension_semantics = [#tpu.dimension_semantics<parallel>], iteration_bounds = array<i64: 1>, scalar_prefetch = 0 : i64, scratch_operands = 0 : i64, tpu.core_type = #tpu.core_type<tc>, window_params = [{transform_indices = @transform_0, window_bounds = array<i64: 16, 16>}, {pipeline_mode = #tpu.pipeline_mode<synchronous>, transform_indices = @transform_1, window_bounds = array<i64: 32, 16>}, {pipeline_mode = #tpu.pipeline_mode<synchronous>, transform_indices = @transform_2, window_bounds = array<i64: 32, 1>}, {pipeline_mode = #tpu.pipeline_mode<synchronous>, transform_indices = @transform_3, window_bounds = array<i64: 8, 32>}, {pipeline_mode = #tpu.pipeline_mode<synchronous>, transform_indices = @transform_4, window_bounds = array<i64: 8, 1>}, {transform_indices = @transform_5, window_bounds = array<i64: 8, 16>}]} {
    %c0 = arith.constant 0 : index
    %c0_0 = arith.constant 0 : index
    %0 = vector.load %arg1[%c0, %c0_0] : memref<16x16xbf16, #tpu.memory_space<vmem>>, vector<16x16xbf16>
    %c0_1 = arith.constant 0 : index
    %c0_2 = arith.constant 0 : index
    %1 = vector.load %arg2[%c0_1, %c0_2] : memref<32x16xbf16, #tpu.memory_space<vmem>>, vector<32x16xbf16>
    %cst = arith.constant dense<0.000000e+00> : vector<32x16xf32>
    %2 = tpu.matmul %1, %0, %cst {dimension_numbers = #tpu.dot_dimension_numbers<[1], [0], [0], [1], [0, 0, 1, 1], [], []>} : vector<32x16xbf16>, vector<16x16xbf16>, vector<32x16xf32> -> vector<32x16xf32>
    %c0_3 = arith.constant 0 : index
    %c0_4 = arith.constant 0 : index
    %3 = vector.load %arg3[%c0_3, %c0_4] : memref<32x1xf32, #tpu.memory_space<vmem>>, vector<32x1xf32>
    %4 = vector.broadcast %3 : vector<32x1xf32> to vector<32x16xf32>
    %5 = arith.addf %2, %4 : vector<32x16xf32>
    %cst_5 = arith.constant 0.000000e+00 : f32
    %6 = vector.broadcast %cst_5 : f32 to vector<32x16xf32>
    %7 = arith.maximumf %5, %6 : vector<32x16xf32>
    %8 = arith.truncf %7 : vector<32x16xf32> to vector<32x16xbf16>
    %c0_6 = arith.constant 0 : index
    %c0_7 = arith.constant 0 : index
    %9 = vector.load %arg4[%c0_6, %c0_7] : memref<8x32xbf16, #tpu.memory_space<vmem>>, vector<8x32xbf16>
    %cst_8 = arith.constant dense<0.000000e+00> : vector<8x16xf32>
    %10 = tpu.matmul %9, %8, %cst_8 {dimension_numbers = #tpu.dot_dimension_numbers<[1], [0], [0], [1], [0, 0, 1, 1], [], []>} : vector<8x32xbf16>, vector<32x16xbf16>, vector<8x16xf32> -> vector<8x16xf32>
    %c0_9 = arith.constant 0 : index
    %c0_10 = arith.constant 0 : index
    %11 = vector.load %arg5[%c0_9, %c0_10] : memref<8x1xf32, #tpu.memory_space<vmem>>, vector<8x1xf32>
    %12 = vector.broadcast %11 : vector<8x1xf32> to vector<8x16xf32>
    %13 = arith.addf %10, %12 : vector<8x16xf32>
    %c0_11 = arith.constant 0 : index
    %c0_12 = arith.constant 0 : index
    %14 = vector.load %arg6[%c0_11, %c0_12] : memref<8x16xf32, #tpu.memory_space<vmem>>, vector<8x16xf32>
    tpu.vector_store %arg6[%c0_11, %c0_12], %13 {strides = array<i32>} : memref<8x16xf32, #tpu.memory_space<vmem>>, vector<8x16xf32>,
    return
  }
  func.func @transform_0(%arg0: i32) -> (i32, i32) {
    %c0_i32 = arith.constant 0 : i32
    %c0_i32_0 = arith.constant 0 : i32
    return %c0_i32, %arg0 : i32, i32
  }
  func.func @transform_1(%arg0: i32) -> (i32, i32) {
    %c0_i32 = arith.constant 0 : i32
    %c0_i32_0 = arith.constant 0 : i32
    %c0_i32_1 = arith.constant 0 : i32
    return %c0_i32, %c0_i32_0 : i32, i32
  }
  func.func @transform_2(%arg0: i32) -> (i32, i32) {
    %c0_i32 = arith.constant 0 : i32
    %c0_i32_0 = arith.constant 0 : i32
    %c0_i32_1 = arith.constant 0 : i32
    return %c0_i32, %c0_i32_0 : i32, i32
  }
  func.func @transform_3(%arg0: i32) -> (i32, i32) {
    %c0_i32 = arith.constant 0 : i32
    %c0_i32_0 = arith.constant 0 : i32
    %c0_i32_1 = arith.constant 0 : i32
    return %c0_i32, %c0_i32_0 : i32, i32
  }
  func.func @transform_4(%arg0: i32) -> (i32, i32) {
    %c0_i32 = arith.constant 0 : i32
    %c0_i32_0 = arith.constant 0 : i32
    %c0_i32_1 = arith.constant 0 : i32
    return %c0_i32, %c0_i32_0 : i32, i32
  }
  func.func @transform_5(%arg0: i32) -> (i32, i32) {
    %c0_i32 = arith.constant 0 : i32
    %c0_i32_0 = arith.constant 0 : i32
    return %c0_i32, %arg0 : i32, i32
  }
}

</mosaic_0001>

<llo_original>
// kernel: tpu_custom_call.1
$region0: #{tpu_custom_call.1}
  #allocation0 [shape = 'u32[]', space=smem, size = 0x4, offset = 0x4, fixed_abs, tag = 'smem constant byte address 0x4 - core index']
  #allocation1 [shape = 'u32[144,128]{1,0:T(1,128)}', space=vmem, size = 0x12000, scoped, tag = 'internal scratch']
  %s0 = inlined_call_operand.vmem [shape: bf16[16,16], index: 0, kind: input, shape index: {}]
  %s1 = inlined_call_operand.vmem [shape: bf16[32,16], index: 1, kind: input, shape index: {}]
  %s2 = inlined_call_operand.vmem [shape: f32[32,1], index: 2, kind: input, shape index: {}]
  %s3 = inlined_call_operand.vmem [shape: bf16[8,32], index: 3, kind: input, shape index: {}]
  %s4 = inlined_call_operand.vmem [shape: f32[8,1], index: 4, kind: input, shape index: {}]
  %s5 = inlined_call_operand.hbm [shape: f32[8,16], index: 5, kind: output, shape index: {}]
  %s6 = sld [smem:[#allocation0]]
  $region30: #{tpu_custom_call.1} parent=0
    _
  %s8 = ssub.s32 1, %s6
  %s9 = scalar_select 0, %s8, %s6
  $region1: #{tpu_custom_call.1} parent=0
    #allocation2 [shape = 'u8[4096]{0}', space=vmem, size = 0x1000, scoped, tag = 'output window, operand 0, single buffered']
    #allocation3 [shape = 's32[1]{0}', space=sflag, size = 0x4, scoped, tag = 'scoped memory for tpu_custom_call.1']
    %10 = vsyncpa [#allocation3], 0
    // Predicated region
    $region2: #{tpu_custom_call.1} parent=1 // pred_check
      _
    $region3: #{tpu_custom_call.1} parent=1 // pred_check_branch
      %12 = sbr.rel (0) target = $region5
    $region4: #{tpu_custom_call.1} parent=1 // pred_region
      _
    $region5: #{tpu_custom_call.1} parent=1 // pred_fallthru
      _
    // Predicated region
    $region6: #{tpu_custom_call.1} parent=1 // pred_check
      _
    $region7: #{tpu_custom_call.1} parent=1 // pred_check_branch
      %14 = sbr.rel (0) target = $region9
    $region8: #{tpu_custom_call.1} parent=1 // pred_region
      _
    $region9: #{tpu_custom_call.1} parent=1 // pred_fallthru
      _
    // Predicated region
    $region10: #{tpu_custom_call.1} parent=1 // pred_check
      _
    $region11: #{tpu_custom_call.1} parent=1 // pred_check_branch
      %16 = sbr.rel (0) target = $region13
    $region12: #{tpu_custom_call.1} parent=1 // pred_region
      _
    $region13: #{tpu_custom_call.1} parent=1 // pred_fallthru
      _
    // Predicated region
    $region14: #{tpu_custom_call.1} parent=1 // pred_check
      _
    $region15: #{tpu_custom_call.1} parent=1 // pred_check_branch
      %18 = sbr.rel (0) target = $region17
    $region16: #{tpu_custom_call.1} parent=1 // pred_region
      _
    $region17: #{tpu_custom_call.1} parent=1 // pred_fallthru
      _
    // Predicated region
    $region18: #{tpu_custom_call.1} parent=1 // pred_check
      _
    $region19: #{tpu_custom_call.1} parent=1 // pred_check_branch
      %20 = sbr.rel (0) target = $region21
    $region20: #{tpu_custom_call.1} parent=1 // pred_region
      _
    $region21: #{tpu_custom_call.1} parent=1 // pred_fallthru
      _
    %v22 = vld [vmem:[%s0] sm:$0xf]
    %v23 = vld [vmem:[%s0 + $0x4] sm:$0xf]
    %v24 = vld [vmem:[%s1] sm:$0xf]
    %v25 = vld [vmem:[%s1 + $0x4] sm:$0xf]
    %v26 = vld [vmem:[%s1 + $0x8] sm:$0xf]
    %v27 = vld [vmem:[%s1 + $0xc] sm:$0xf]
    %v28 = vld [vmem:[%s2] sm:$0xff]
    %v29 = vld [vmem:[%s2 + $0x8] sm:$0xff]
    %v30 = vld [vmem:[%s2 + $0x10] sm:$0xff]
    %v31 = vld [vmem:[%s2 + $0x18] sm:$0xff]
    %33 = vset.pattern.permute.xlu0 0
    %34 = vperm.xlu0 %33, %v28
    %v35 = vpop.permute.xlu0 %34
    %38 = vset.pattern.permute.xlu0 0
    %39 = vperm.xlu0 %38, %v29
    %v40 = vpop.permute.xlu0 %39
    %43 = vset.pattern.permute.xlu0 0
    %44 = vperm.xlu0 %43, %v30
    %v45 = vpop.permute.xlu0 %44
    %48 = vset.pattern.permute.xlu0 0
    %49 = vperm.xlu0 %48, %v31
    %v50 = vpop.permute.xlu0 %49
    %v56 = vunpack.c.l.b16 %v24
    %v57 = vunpack.c.l.b16 %v25
    %v58 = vunpack.c.l.b16 %v26
    %v59 = vunpack.c.l.b16 %v27
    %v60 = vpack.c.b16 %v57, %v56
    %v61 = vpack.c.b16 %v59, %v58
    %v64 = vunpack.c.l.b16 %v22
    %v65 = vunpack.c.l.b16 %v23
    %v66 = vpack.c.b16 %v65, %v64
    %vm68 = vcmask 130048
    %v70 = vsel %vm68, %v60, 0
    %v73 = vsel %vm68, %v61, 0
    %75 = vmatprep.subr.bf16.mxu0 0
    %76 = vmatpush1.bf16.msra.mxu0 %v66
    %77 = vmatprep.subr.bf16.mxu0 0
    %78 = vmatpush1.bf16.msra.mxu0 0
    %79 = vmatprep.subr.bf16.mxu0 0
    %80 = vmatpush1.bf16.msra.mxu0 0
    %81 = vmatprep.subr.bf16.mxu0 0
    %82 = vmatpush1.bf16.msra.mxu0 0
    %83 = vmatprep.subr.bf16.mxu0 0
    %84 = vmatpush1.bf16.msra.mxu0 0
    %85 = vmatprep.subr.bf16.mxu0 0
    %86 = vmatpush1.bf16.msra.mxu0 0
    %87 = vmatprep.subr.bf16.mxu0 0
    %88 = vmatpush1.bf16.msra.mxu0 0
    %89 = vmatprep.subr.bf16.mxu0 0
    %90 = vmatpush1.bf16.msra.mxu0 0
    %91 = vmatprep.subr.bf16.mxu0 0
    %92 = vmatpush1.bf16.msra.mxu0 0
    %93 = vmatprep.subr.bf16.mxu0 0
    %94 = vmatpush1.bf16.msra.mxu0 0
    %95 = vmatprep.subr.bf16.mxu0 0
    %96 = vmatpush1.bf16.msra.mxu0 0
    %97 = vmatprep.subr.bf16.mxu0 0
    %98 = vmatpush1.bf16.msra.mxu0 0
    %99 = vmatprep.subr.bf16.mxu0 0
    %100 = vmatpush1.bf16.msra.mxu0 0
    %101 = vmatprep.subr.bf16.mxu0 0
    %102 = vmatpush1.bf16.msra.mxu0 0
    %103 = vmatprep.subr.bf16.mxu0 0
    %104 = vmatpush1.bf16.msra.mxu0 0
    %105 = vmatprep.subr.bf16.mxu0 0
    %106 = vmatpush1.bf16.msra.mxu0 0
    %107 = vmatprep.mubr.bf16.mxu0 0
    %108 = vmatmul.mubr.bf16.gmra.mrb[0].mxu0 %v70
    %v109 = vpop.f32.mrb[0].mxu0
    %v110 = vadd.f32 %v35, %v109
    %v111 = vpop.f32.mrb[0].mxu0
    %v112 = vpop.f32.mrb[0].mxu0
    %v113 = vadd.f32 %v40, %v112
    %v114 = vpop.f32.mrb[0].mxu0
    %115 = vmatprep.mubr.bf16.mxu0 0
    %116 = vmatmul.mubr.bf16.gmra.mrb[0].mxu0 %v73
    %v117 = vpop.f32.mrb[0].mxu0
    %v118 = vadd.f32 %v45, %v117
    %v119 = vpop.f32.mrb[0].mxu0
    %v120 = vpop.f32.mrb[0].mxu0
    %v121 = vadd.f32 %v50, %v120
    %v122 = vpop.f32.mrb[0].mxu0
    %123 = vdwg.mxu0
    %v124 = vmax.f32 %v110, 0.0
    %v125 = vmax.f32 %v113, 0.0
    %v126 = vmax.f32 %v118, 0.0
    %v127 = vmax.f32 %v121, 0.0
    %v128 = vpack.c.bf16 %v125, %v124
    %v129 = vpack.c.bf16 %v127, %v126
    %v130 = vld [vmem:[%s3] sm:$0xf]
    %v131 = vld [vmem:[%s4] sm:$0xff]
    %133 = vset.pattern.permute.xlu0 0
    %134 = vperm.xlu0 %133, %v131
    %v135 = vpop.permute.xlu0 %134
    %vm137 = vcmask 261120
    %v139 = vsel %vm137, %v130, 0
    %141 = vmatprep.subr.bf16.mxu0 0
    %142 = vmatpush1.bf16.msra.mxu0 %v128
    %143 = vmatprep.subr.bf16.mxu0 0
    %144 = vmatpush1.bf16.msra.mxu0 %v129
    %145 = vmatprep.subr.bf16.mxu0 0
    %146 = vmatpush1.bf16.msra.mxu0 0
    %147 = vmatprep.subr.bf16.mxu0 0
    %148 = vmatpush1.bf16.msra.mxu0 0
    %149 = vmatprep.subr.bf16.mxu0 0
    %150 = vmatpush1.bf16.msra.mxu0 0
    %151 = vmatprep.subr.bf16.mxu0 0
    %152 = vmatpush1.bf16.msra.mxu0 0
    %153 = vmatprep.subr.bf16.mxu0 0
    %154 = vmatpush1.bf16.msra.mxu0 0
    %155 = vmatprep.subr.bf16.mxu0 0
    %156 = vmatpush1.bf16.msra.mxu0 0
    %157 = vmatprep.subr.bf16.mxu0 0
    %158 = vmatpush1.bf16.msra.mxu0 0
    %159 = vmatprep.subr.bf16.mxu0 0
    %160 = vmatpush1.bf16.msra.mxu0 0
    %161 = vmatprep.subr.bf16.mxu0 0
    %162 = vmatpush1.bf16.msra.mxu0 0
    %163 = vmatprep.subr.bf16.mxu0 0
    %164 = vmatpush1.bf16.msra.mxu0 0
    %165 = vmatprep.subr.bf16.mxu0 0
    %166 = vmatpush1.bf16.msra.mxu0 0
    %167 = vmatprep.subr.bf16.mxu0 0
    %168 = vmatpush1.bf16.msra.mxu0 0
    %169 = vmatprep.subr.bf16.mxu0 0
    %170 = vmatpush1.bf16.msra.mxu0 0
    %171 = vmatprep.subr.bf16.mxu0 0
    %172 = vmatpush1.bf16.msra.mxu0 0
    %173 = vmatprep.mubr.bf16.mxu0 0
    %174 = vmatmul.mubr.bf16.gmra.mrb[0].mxu0 %v139
    %v175 = vpop.f32.mrb[0].mxu0
    %v176 = vadd.f32 %v135, %v175
    %v177 = vpop.f32.mrb[0].mxu0
    %v178 = vpop.f32.mrb[0].mxu0
    %v179 = vpop.f32.mrb[0].mxu0
    %180 = vdwg.mxu0
    %181 = vst.msk [vmem:[#allocation2] sm:$0xff] %vm68, %v176
    // Predicated region
    $region22: #{tpu_custom_call.1} parent=1 // pred_check
      _
    $region23: #{tpu_custom_call.1} parent=1 // pred_check_branch
      %183 = sbr.rel (0) target = $region25
    $region24: #{tpu_custom_call.1} parent=1 // pred_region
      %s185 = ssub.s32 128, 128
      %186 = vsyncadd [#allocation3], %s185
      %s188 = sshll.u32 [#allocation2], 4
      %s189 = int_to_ptr.vmem [resolvable:$true] %s188
      %191 = dma.vmem_to_hbm [thread:$0]  %s189, 128, %s5, [#allocation3]
    $region25: #{tpu_custom_call.1} parent=1 // pred_fallthru
      _
    // Predicated region
    $region26: #{tpu_custom_call.1} parent=1 // pred_check
      _
    $region27: #{tpu_custom_call.1} parent=1 // pred_check_branch
      %193 = sbr.rel (0) target = $region29
    $region28: #{tpu_custom_call.1} parent=1 // pred_region
      %194 = dma.done [#allocation3], 128
    $region29: #{tpu_custom_call.1} parent=1 // pred_fallthru
      _
    %195 = vsyncpa [#allocation3], 1

</llo_original>
